<compile_context>
chip_gen: v6e
topology: v6e:2x2x1
jax: 0.10.0
libtpu: 0.0.40
codegen_flags: <defaults>
</compile_context>

<pallas_src>
import jax
import jax.numpy as jnp
from jax.experimental import pallas as pl
from jax.experimental.pallas import tpu as pltpu


def attention14_kernel(x_ref, w_ref, ctx_ref, attn_ref):
    # x_ref:    (TB, S, H) block of lstm_outputs, native dtype (read once)
    # w_ref:    (1, H)     attention weight row, float32, resident
    # ctx_ref:  (TB, H)    output context
    # attn_ref: (TB, S)    output attention weights (lane-dense: S on lanes)
    x = x_ref[...]                                  # native dtype, no f32 copy
    w = w_ref[...]                                  # (1, H) float32
    if w.dtype != x.dtype:
        # Sub-32-bit inputs: feed the MXU in its native mixed-precision mode.
        # The (1, H) weight rounding error is negligible vs. input precision.
        w = w.astype(x.dtype)

    tb, _, h = x.shape
    wb = jnp.broadcast_to(w[None], (tb, 1, h))      # (TB, 1, H), hoisted

    # Linear(H -> 1) on the MXU: scores[b, 0, s] = sum_h w[h] * x[b, s, h].
    # Bias omitted: softmax is shift-invariant, outputs are unchanged.
    scores = jnp.einsum("bqh,bsh->bqs", wb, x,
                        preferred_element_type=jnp.float32)     # (TB, 1, S)

    # Softmax over the sequence axis (PyTorch dim=1); S sits on lanes.
    m = jnp.max(scores, axis=-1, keepdims=True)                  # (TB, 1, 1)
    e = jnp.exp(scores - m)                                      # (TB, 1, S)
    denom = jnp.sum(e, axis=-1, keepdims=True)                   # (TB, 1, 1)
    # EUP approximate reciprocal + one Newton step -> ~f32 accuracy without
    # an exact VALU divide.
    r = pl.reciprocal(denom, approx=True)
    r = r * (2.0 - denom * r)
    weights = e * r                                              # (TB, 1, S) f32

    # context[b, h] = sum_s weights[b, s] * x[b, s, h]  -- MXU, f32 accumulate.
    ctx = jnp.einsum("bqs,bsh->bqh", weights.astype(x.dtype), x,
                     preferred_element_type=jnp.float32)         # (TB, 1, H)

    ctx_ref[...] = ctx[:, 0, :].astype(ctx_ref.dtype)            # (TB, H)
    attn_ref[...] = weights[:, 0, :].astype(attn_ref.dtype)      # (TB, S)


def _vmem_capacity_bytes():
    """Physical VMEM of the current TPU generation (fallback: v7x's 64 MiB)."""
    try:
        info = pltpu.get_tpu_info()
        cap = int(getattr(info, "vmem_capacity_bytes", 0) or 0)
        if cap > 0:
            return cap
    except Exception:
        pass
    return 64 * 1024 * 1024


def _sublane_pack(itemsize):
    # 8 rows for 32-bit, 16 for 16-bit, 32 for 8-bit dtypes.
    return max(8, (8 * 4) // itemsize)


def _round_up(x, m):
    return ((x + m - 1) // m) * m


def _choose_batch_block(B, S, H, itemsize, pack, per_block_bytes):
    """Batch tile TB for the (TB, S, H) input block.

    * TB is a multiple of 8 (sublane legality) unless it equals B.
    * Rounded to the dtype sublane pack to avoid masked partial stores.
    * Kept under the per-buffer soft budget (double-buffering headroom).
    * Prefers >= 2 grid steps so the "parallel" batch axis can be sharded
      across v7x's two TensorCores.
    """
    row_bytes = S * H * itemsize
    cap = per_block_bytes // row_bytes          # rows fitting the soft budget
    if cap >= B:
        if B >= 2 * pack:
            # Whole batch would fit one block; split in two for v7x megacore.
            return min(B, _round_up(-(-B // 2), pack))
        return B
    if cap >= pack:
        return (cap // pack) * pack
    if B >= 8:
        # Even the legality-floor block exceeds the soft budget; the caller
        # raises vmem_limit_bytes to cover it.
        # TODO(synk): for very large S*H add an S-chunk grid axis with an
        # online-softmax accumulator instead of one monolithic (8, S, H) block.
        return 8
    return B


def attention14(lstm_outputs, weight, bias=None, *, batch_block=None):
    """lstm_outputs: (B, S, H); weight: (1, H); bias: (1,) (unused — softmax is
    shift-invariant so the returned outputs do not depend on it).
    Returns (context (B, H), attn_weights (B, S, 1))."""
    del bias  # dead compute: exp(s + b - (m + b)) == exp(s - m)
    B, S, H = lstm_outputs.shape
    dtype = lstm_outputs.dtype
    itemsize = jnp.dtype(dtype).itemsize
    pack = _sublane_pack(itemsize)

    vmem_cap = _vmem_capacity_bytes()
    # ~8 MiB/buffer on v5e/v6e (128 MiB VMEM), ~4 MiB on v7x (64 MiB VMEM).
    per_block_bytes = max(vmem_cap // 16, 1 << 20)

    tb = batch_block or _choose_batch_block(B, S, H, itemsize, pack,
                                            per_block_bytes)
    grid = (pl.cdiv(B, tb),)

    # Explicit VMEM budget: 2x input block (double buffer) + 2x each output
    # block + live f32 temporaries (padded (TB,1,S) softmax tiles, f32 ctx,
    # broadcast weight) + slack.
    x_block = tb * S * H * itemsize
    out_blocks = tb * (S + H) * itemsize
    temps = tb * (8 * S + 2 * H) * 4 + tb * H * itemsize + H * 4
    needed = 2 * x_block + 2 * out_blocks + temps + (2 << 20)
    vmem_limit = int(min(max(vmem_cap // 2, needed), (vmem_cap * 7) // 8))

    weight_f32 = weight.reshape(1, H).astype(jnp.float32)

    ctx, attn2d = pl.pallas_call(
        attention14_kernel,
        out_shape=(
            jax.ShapeDtypeStruct((B, H), dtype),
            jax.ShapeDtypeStruct((B, S), dtype),
        ),
        grid_spec=pltpu.PrefetchScalarGridSpec(
            num_scalar_prefetch=0,
            grid=grid,
            in_specs=[
                pl.BlockSpec((tb, S, H), lambda i: (i, 0, 0)),
                pl.BlockSpec((1, H), lambda i: (0, 0)),
            ],
            out_specs=(
                pl.BlockSpec((tb, H), lambda i: (i, 0)),
                pl.BlockSpec((tb, S), lambda i: (i, 0)),
            ),
        ),
        compiler_params=pltpu.CompilerParams(
            dimension_semantics=("parallel",),
            vmem_limit_bytes=vmem_limit,
        ),
    )(lstm_outputs, weight_f32)

    # Restore the PyTorch (B, S, 1) attention-weights shape (free reshape).
    return ctx, attn2d[:, :, None]


def attention14_ref(lstm_outputs, weight, bias):
    scores = jnp.einsum("bsh,oh->bso", lstm_outputs, weight) + bias  # (B, S, 1)
    w = jax.nn.softmax(scores, axis=1)
    ctx = jnp.sum(lstm_outputs * w, axis=1)
    return ctx, w


if __name__ == "__main__":
    B, S, H = 2, 8, 32
    key = jax.random.PRNGKey(0)
    kx, kw, kb = jax.random.split(key, 3)

    lstm_outputs = jax.random.normal(kx, (B, S, H), dtype=jnp.float32)
    # nn.Linear(hidden_dim, 1): weight (1, H), bias (1,)
    attn_weight = jax.random.normal(kw, (1, H), dtype=jnp.float32) * 0.1
    attn_bias = jax.random.normal(kb, (1,), dtype=jnp.float32) * 0.1

    context, attn_weights = attention14(lstm_outputs, attn_weight, attn_bias)
    jax.block_until_ready((context, attn_weights))

    ctx_ref, attn_ref = attention14_ref(lstm_outputs, attn_weight, attn_bias)
    assert context.shape == (B, H)
    assert attn_weights.shape == (B, S, 1)
    assert jnp.allclose(context, ctx_ref, atol=1e-5, rtol=1e-4)
    assert jnp.allclose(attn_weights, attn_ref, atol=1e-5, rtol=1e-4)

    print("KERNEL_OK")
</pallas_src>

<mosaic_0001>
module attributes {stable_mosaic.version = 11 : i64} {
  func.func @attention14_kernel(%arg0: i32, %arg1: memref<2x8x32xf32, #tpu.memory_space<vmem>>, %arg2: memref<1x32xf32, #tpu.memory_space<vmem>>, %arg3: memref<2x32xf32, #tpu.memory_space<vmem>>, %arg4: memref<2x8xf32, #tpu.memory_space<vmem>>) attributes {dimension_semantics = [#tpu.dimension_semantics<parallel>], iteration_bounds = array<i64: 1>, scalar_prefetch = 0 : i64, scratch_operands = 0 : i64, tpu.core_type = #tpu.core_type<tc>, window_params = [{transform_indices = @transform_0, window_bounds = array<i64: 2, 8, 32>}, {pipeline_mode = #tpu.pipeline_mode<synchronous>, transform_indices = @transform_1, window_bounds = array<i64: 1, 32>}, {transform_indices = @transform_2, window_bounds = array<i64: 2, 32>}, {transform_indices = @transform_3, window_bounds = array<i64: 2, 8>}]} {
    %c0 = arith.constant 0 : index
    %c0_0 = arith.constant 0 : index
    %c0_1 = arith.constant 0 : index
    %0 = vector.load %arg1[%c0, %c0_0, %c0_1] : memref<2x8x32xf32, #tpu.memory_space<vmem>>, vector<2x8x32xf32>
    %c0_2 = arith.constant 0 : index
    %c0_3 = arith.constant 0 : index
    %1 = vector.load %arg2[%c0_2, %c0_3] : memref<1x32xf32, #tpu.memory_space<vmem>>, vector<1x32xf32>
    %2 = vector.shape_cast %1 : vector<1x32xf32> to vector<1x1x32xf32>
    %3 = vector.shape_cast %2 : vector<1x1x32xf32> to vector<1x1x32xf32>
    %4 = vector.broadcast %3 : vector<1x1x32xf32> to vector<2x1x32xf32>
    "tpu.trace_start"() <{level = 10 : i32, message = "bqh,bsh->bqs"}> : () -> ()
    %cst = arith.constant dense<0.000000e+00> : vector<2x1x8xf32>
    %5 = tpu.matmul %4, %0, %cst {dimension_numbers = #tpu.dot_dimension_numbers<[2], [2], [1], [1], [0, 0, 0, 1, 1, 1], [0], [0]>} : vector<2x1x32xf32>, vector<2x8x32xf32>, vector<2x1x8xf32> -> vector<2x1x8xf32>
    "tpu.trace_stop"() : () -> ()
    %cst_4 = arith.constant dense<0xFF800000> : vector<2x1xf32>
    %6 = vector.multi_reduction <maximumf>, %5, %cst_4 [2] : vector<2x1x8xf32> to vector<2x1xf32>
    %7 = vector.shape_cast %6 : vector<2x1xf32> to vector<2x1x1xf32>
    %8 = vector.broadcast %7 : vector<2x1x1xf32> to vector<2x1x8xf32>
    %9 = arith.subf %5, %8 : vector<2x1x8xf32>
    %10 = math.exp %9 : vector<2x1x8xf32>
    %cst_5 = arith.constant dense<0.000000e+00> : vector<2x1xf32>
    %11 = vector.multi_reduction <add>, %10, %cst_5 [2] : vector<2x1x8xf32> to vector<2x1xf32>
    %12 = vector.shape_cast %11 : vector<2x1xf32> to vector<2x1x1xf32>
    %13 = tpu.reciprocal %12 {approx = true} : vector<2x1x1xf32> -> vector<2x1x1xf32>
    %14 = arith.mulf %12, %13 : vector<2x1x1xf32>
    %cst_6 = arith.constant 2.000000e+00 : f32
    %15 = vector.broadcast %cst_6 : f32 to vector<2x1x1xf32>
    %16 = arith.subf %15, %14 : vector<2x1x1xf32>
    %17 = arith.mulf %13, %16 : vector<2x1x1xf32>
    %18 = vector.broadcast %17 : vector<2x1x1xf32> to vector<2x1x8xf32>
    %19 = arith.mulf %10, %18 : vector<2x1x8xf32>
    "tpu.trace_start"() <{level = 10 : i32, message = "bqs,bsh->bqh"}> : () -> ()
    %cst_7 = arith.constant dense<0.000000e+00> : vector<2x1x32xf32>
    %20 = tpu.matmul %19, %0, %cst_7 {dimension_numbers = #tpu.dot_dimension_numbers<[2], [1], [1], [2], [0, 0, 0, 1, 1, 2], [0], [0]>} : vector<2x1x8xf32>, vector<2x8x32xf32>, vector<2x1x32xf32> -> vector<2x1x32xf32>
    "tpu.trace_stop"() : () -> ()
    %21 = vector.shape_cast %20 : vector<2x1x32xf32> to vector<2x32xf32>
    %c0_8 = arith.constant 0 : index
    %c0_9 = arith.constant 0 : index
    %22 = vector.load %arg3[%c0_8, %c0_9] : memref<2x32xf32, #tpu.memory_space<vmem>>, vector<2x32xf32>
    tpu.vector_store %arg3[%c0_8, %c0_9], %21 {strides = array<i32>} : memref<2x32xf32, #tpu.memory_space<vmem>>, vector<2x32xf32>,
    %23 = vector.shape_cast %19 : vector<2x1x8xf32> to vector<2x8xf32>
    %c0_10 = arith.constant 0 : index
    %c0_11 = arith.constant 0 : index
    %24 = vector.load %arg4[%c0_10, %c0_11] : memref<2x8xf32, #tpu.memory_space<vmem>>, vector<2x8xf32>
    tpu.vector_store %arg4[%c0_10, %c0_11], %23 {strides = array<i32>} : memref<2x8xf32, #tpu.memory_space<vmem>>, vector<2x8xf32>,
    return
  }
  func.func @transform_0(%arg0: i32) -> (i32, i32, i32) {
    %c0_i32 = arith.constant 0 : i32
    %c0_i32_0 = arith.constant 0 : i32
    %c0_i32_1 = arith.constant 0 : i32
    return %arg0, %c0_i32, %c0_i32_0 : i32, i32, i32
  }
  func.func @transform_1(%arg0: i32) -> (i32, i32) {
    %c0_i32 = arith.constant 0 : i32
    %c0_i32_0 = arith.constant 0 : i32
    %c0_i32_1 = arith.constant 0 : i32
    return %c0_i32, %c0_i32_0 : i32, i32
  }
  func.func @transform_2(%arg0: i32) -> (i32, i32) {
    %c0_i32 = arith.constant 0 : i32
    %c0_i32_0 = arith.constant 0 : i32
    return %arg0, %c0_i32 : i32, i32
  }
  func.func @transform_3(%arg0: i32) -> (i32, i32) {
    %c0_i32 = arith.constant 0 : i32
    %c0_i32_0 = arith.constant 0 : i32
    return %arg0, %c0_i32 : i32, i32
  }
}

</mosaic_0001>

<llo_original>
// kernel: tpu_custom_call.1
$region0: #{tpu_custom_call.1}
  #allocation0 [shape = 'u32[]', space=smem, size = 0x4, offset = 0x4, fixed_abs, tag = 'smem constant byte address 0x4 - core index']
  #allocation1 [shape = 'u32[144,128]{1,0:T(1,128)}', space=vmem, size = 0x12000, scoped, tag = 'internal scratch']
  %s0 = inlined_call_operand.hbm [shape: f32[2,8,32], index: 0, kind: input, shape index: {}]
  %s1 = inlined_call_operand.vmem [shape: f32[1,32], index: 1, kind: input, shape index: {}]
  %s2 = inlined_call_operand.hbm [shape: f32[2,32], index: 2, kind: output, shape index: {0}]
  %s3 = inlined_call_operand.hbm [shape: f32[2,8], index: 3, kind: output, shape index: {1}]
  %4 = xla_tuple %s2, %s3
  %s5 = sld [smem:[#allocation0]]
  $region30: #{tpu_custom_call.1} parent=0
    _
  %s7 = ssub.s32 1, %s5
  %s8 = scalar_select 0, %s7, %s5
  $region1: #{tpu_custom_call.1} parent=0
    #allocation2 [shape = 'u8[8192]{0}', space=vmem, size = 0x2000, scoped, tag = 'input window, operand 0, single buffered']
    #allocation3 [shape = 's32[1]{0}', space=sflag, size = 0x4, scoped, tag = 'scoped memory for tpu_custom_call.1']
    #allocation4 [shape = 's32[1]{0}', space=sflag, size = 0x4, scoped, tag = 'scoped memory for tpu_custom_call.1']
    #allocation5 [shape = 'u8[1024]{0}', space=vmem, size = 0x400, scoped, tag = 'output window, operand 0, single buffered']
    #allocation6 [shape = 'u8[1024]{0}', space=vmem, size = 0x400, scoped, tag = 'output window, operand 1, single buffered']
    #allocation7 [shape = 's32[1]{0}', space=sflag, size = 0x4, scoped, tag = 'scoped memory for tpu_custom_call.1']
    %9 = vsyncpa [#allocation3], 0
    %10 = vsyncpa [#allocation4], 0
    %11 = vsyncpa [#allocation7], 0
    // Predicated region
    $region2: #{tpu_custom_call.1} parent=1 // pred_check
      _
    $region3: #{tpu_custom_call.1} parent=1 // pred_check_branch
      %13 = sbr.rel (0) target = $region5
    $region4: #{tpu_custom_call.1} parent=1 // pred_region
      %s15 = ssub.s32 256, 256
      %16 = vsyncadd [#allocation3], %s15
      %s17 = sshll.u32 [#allocation2], 4
      %s18 = int_to_ptr.vmem [resolvable:$true] %s17
      %23 = dma.hbm_to_vmem [thread:$0]  %s0, 256, %s18, [#allocation3], 128, 128, 8
    $region5: #{tpu_custom_call.1} parent=1 // pred_fallthru
      _
    // Predicated region
    $region6: #{tpu_custom_call.1} parent=1 // pred_check
      _
    $region7: #{tpu_custom_call.1} parent=1 // pred_check_branch
      %25 = sbr.rel (0) target = $region9
    $region8: #{tpu_custom_call.1} parent=1 // pred_region
      _
    $region9: #{tpu_custom_call.1} parent=1 // pred_fallthru
      _
    // Predicated region
    $region10: #{tpu_custom_call.1} parent=1 // pred_check
      _
    $region11: #{tpu_custom_call.1} parent=1 // pred_check_branch
      %27 = sbr.rel (0) target = $region13
    $region12: #{tpu_custom_call.1} parent=1 // pred_region
      %28 = dma.done [#allocation3], 256
    $region13: #{tpu_custom_call.1} parent=1 // pred_fallthru
      _
    %v29 = vld [vmem:[#allocation2] sm:$0xff]
    %v30 = vld [vmem:[#allocation2 + $0x8] sm:$0xff]
    %v31 = vld [vmem:[%s1] sm:$0x1]
    %vm32 = vcmask 261120
    %v34 = vsel %vm32, %v31, 0
    %v37 = vsel %vm32, %v29, 0
    %39 = vmatprep.subr.mxu0 0.0
    %40 = vmatpush1.xpose.msra.mxu0 0.0
    %41 = vmatprep.subr.mxu0 0.0
    %42 = vmatpush1.xpose.msra.mxu0 0.0
    %43 = vmatprep.subr.mxu0 0.0
    %44 = vmatpush1.xpose.msra.mxu0 0.0
    %45 = vmatprep.subr.mxu0 0.0
    %46 = vmatpush1.xpose.msra.mxu0 0.0
    %47 = vmatprep.subr.mxu0 0.0
    %48 = vmatpush1.xpose.msra.mxu0 0.0
    %49 = vmatprep.subr.mxu0 0.0
    %50 = vmatpush1.xpose.msra.mxu0 0.0
    %51 = vmatprep.subr.mxu0 0.0
    %52 = vmatpush1.xpose.msra.mxu0 0.0
    %53 = vmatprep.subr.mxu0 0.0
    %54 = vmatpush1.xpose.msra.mxu0 0.0
    %55 = vmatprep.subr.mxu0 0.0
    %56 = vmatpush1.xpose.msra.mxu0 0.0
    %57 = vmatprep.subr.mxu0 0.0
    %58 = vmatpush1.xpose.msra.mxu0 0.0
    %59 = vmatprep.subr.mxu0 0.0
    %60 = vmatpush1.xpose.msra.mxu0 0.0
    %61 = vmatprep.subr.mxu0 0.0
    %62 = vmatpush1.xpose.msra.mxu0 0.0
    %63 = vmatprep.subr.mxu0 0.0
    %64 = vmatpush1.xpose.msra.mxu0 0.0
    %65 = vmatprep.subr.mxu0 0.0
    %66 = vmatpush1.xpose.msra.mxu0 0.0
    %67 = vmatprep.subr.mxu0 0.0
    %68 = vmatpush1.xpose.msra.mxu0 0.0
    %69 = vmatprep.subr.mxu0 0.0
    %70 = vmatpush1.xpose.msra.mxu0 %v37
    %71 = vmatprep.subr.mxu0 0.0
    %72 = vmatpush2.xpose.msra.mxu0 0.0
    %73 = vmatprep.subr.mxu0 0.0
    %74 = vmatpush2.xpose.msra.mxu0 0.0
    %75 = vmatprep.subr.mxu0 0.0
    %76 = vmatpush2.xpose.msra.mxu0 0.0
    %77 = vmatprep.subr.mxu0 0.0
    %78 = vmatpush2.xpose.msra.mxu0 0.0
    %79 = vmatprep.subr.mxu0 0.0
    %80 = vmatpush2.xpose.msra.mxu0 0.0
    %81 = vmatprep.subr.mxu0 0.0
    %82 = vmatpush2.xpose.msra.mxu0 0.0
    %83 = vmatprep.subr.mxu0 0.0
    %84 = vmatpush2.xpose.msra.mxu0 0.0
    %85 = vmatprep.subr.mxu0 0.0
    %86 = vmatpush2.xpose.msra.mxu0 0.0
    %87 = vmatprep.subr.mxu0 0.0
    %88 = vmatpush2.xpose.msra.mxu0 0.0
    %89 = vmatprep.subr.mxu0 0.0
    %90 = vmatpush2.xpose.msra.mxu0 0.0
    %91 = vmatprep.subr.mxu0 0.0
    %92 = vmatpush2.xpose.msra.mxu0 0.0
    %93 = vmatprep.subr.mxu0 0.0
    %94 = vmatpush2.xpose.msra.mxu0 0.0
    %95 = vmatprep.subr.mxu0 0.0
    %96 = vmatpush2.xpose.msra.mxu0 0.0
    %97 = vmatprep.subr.mxu0 0.0
    %98 = vmatpush2.xpose.msra.mxu0 0.0
    %99 = vmatprep.subr.mxu0 0.0
    %100 = vmatpush2.xpose.msra.mxu0 0.0
    %101 = vmatprep.subr.mxu0 0.0
    %102 = vmatpush2.xpose.msra.mxu0 0.0
    %103 = vmatprep.mubr.f32.mxu0 0.0
    %104 = vmatmul.mubr.f32.gmra.mxu0 %v34
    %v105 = vpop.f32.mrf.mxu0
    %v106 = vadd.f32 0.0, %v105
    %v107 = vpop.f32.mrf.mxu0
    %108 = vdwg.mxu0
    %v110 = vsel %vm32, %v30, 0
    %112 = vmatprep.subr.mxu0 0.0
    %113 = vmatpush1.xpose.msra.mxu0 0.0
    %114 = vmatprep.subr.mxu0 0.0
    %115 = vmatpush1.xpose.msra.mxu0 0.0
    %116 = vmatprep.subr.mxu0 0.0
    %117 = vmatpush1.xpose.msra.mxu0 0.0
    %118 = vmatprep.subr.mxu0 0.0
    %119 = vmatpush1.xpose.msra.mxu0 0.0
    %120 = vmatprep.subr.mxu0 0.0
    %121 = vmatpush1.xpose.msra.mxu0 0.0
    %122 = vmatprep.subr.mxu0 0.0
    %123 = vmatpush1.xpose.msra.mxu0 0.0
    %124 = vmatprep.subr.mxu0 0.0
    %125 = vmatpush1.xpose.msra.mxu0 0.0
    %126 = vmatprep.subr.mxu0 0.0
    %127 = vmatpush1.xpose.msra.mxu0 0.0
    %128 = vmatprep.subr.mxu0 0.0
    %129 = vmatpush1.xpose.msra.mxu0 0.0
    %130 = vmatprep.subr.mxu0 0.0
    %131 = vmatpush1.xpose.msra.mxu0 0.0
    %132 = vmatprep.subr.mxu0 0.0
    %133 = vmatpush1.xpose.msra.mxu0 0.0
    %134 = vmatprep.subr.mxu0 0.0
    %135 = vmatpush1.xpose.msra.mxu0 0.0
    %136 = vmatprep.subr.mxu0 0.0
    %137 = vmatpush1.xpose.msra.mxu0 0.0
    %138 = vmatprep.subr.mxu0 0.0
    %139 = vmatpush1.xpose.msra.mxu0 0.0
    %140 = vmatprep.subr.mxu0 0.0
    %141 = vmatpush1.xpose.msra.mxu0 0.0
    %142 = vmatprep.subr.mxu0 0.0
    %143 = vmatpush1.xpose.msra.mxu0 %v110
    %144 = vmatprep.subr.mxu0 0.0
    %145 = vmatpush2.xpose.msra.mxu0 0.0
    %146 = vmatprep.subr.mxu0 0.0
    %147 = vmatpush2.xpose.msra.mxu0 0.0
    %148 = vmatprep.subr.mxu0 0.0
    %149 = vmatpush2.xpose.msra.mxu0 0.0
    %150 = vmatprep.subr.mxu0 0.0
    %151 = vmatpush2.xpose.msra.mxu0 0.0
    %152 = vmatprep.subr.mxu0 0.0
    %153 = vmatpush2.xpose.msra.mxu0 0.0
    %154 = vmatprep.subr.mxu0 0.0
    %155 = vmatpush2.xpose.msra.mxu0 0.0
    %156 = vmatprep.subr.mxu0 0.0
    %157 = vmatpush2.xpose.msra.mxu0 0.0
    %158 = vmatprep.subr.mxu0 0.0
    %159 = vmatpush2.xpose.msra.mxu0 0.0
    %160 = vmatprep.subr.mxu0 0.0
    %161 = vmatpush2.xpose.msra.mxu0 0.0
    %162 = vmatprep.subr.mxu0 0.0
    %163 = vmatpush2.xpose.msra.mxu0 0.0
    %164 = vmatprep.subr.mxu0 0.0
    %165 = vmatpush2.xpose.msra.mxu0 0.0
    %166 = vmatprep.subr.mxu0 0.0
    %167 = vmatpush2.xpose.msra.mxu0 0.0
    %168 = vmatprep.subr.mxu0 0.0
    %169 = vmatpush2.xpose.msra.mxu0 0.0
    %170 = vmatprep.subr.mxu0 0.0
    %171 = vmatpush2.xpose.msra.mxu0 0.0
    %172 = vmatprep.subr.mxu0 0.0
    %173 = vmatpush2.xpose.msra.mxu0 0.0
    %174 = vmatprep.subr.mxu0 0.0
    %175 = vmatpush2.xpose.msra.mxu0 0.0
    %176 = vmatprep.mubr.f32.mxu0 0.0
    %177 = vmatmul.mubr.f32.gmra.mxu0 %v34
    %v178 = vpop.f32.mrf.mxu0
    %v179 = vadd.f32 0.0, %v178
    %v180 = vpop.f32.mrf.mxu0
    %181 = vdwg.mxu0
    %vm182 = vcmask 57344
    %v183 = vsel %vm182, %v106, -inf
    %184 = vmax.xlane.f32.xlu0 %v183
    %v185 = vpop.xlane.xlu0 %184
    %v186 = vsel %vm182, %v179, -inf
    %187 = vmax.xlane.f32.xlu0 %v186
    %v188 = vpop.xlane.xlu0 %187
    %v189 = vsub.f32 %v106, %v185
    %v190 = vsub.f32 %v179, %v188
    %v191 = vmul.f32 %v189, 1.442695
    %v192 = vpow.pop %v191
    %v193 = vmul.f32 %v190, 1.442695
    %v194 = vpow.pop %v193
    %v195 = vsel %vm182, %v192, 0.0
    %196 = vadd.xlane.f32.xlu0 %v195
    %v197 = vpop.xlane.xlu0 %196
    %v198 = vsel %vm182, %v194, 0.0
    %199 = vadd.xlane.f32.xlu0 %v198
    %v200 = vpop.xlane.xlu0 %199
    %v201 = vrcp.pop %v197
    %v202 = vrcp.pop %v200
    %v203 = vmul.f32 %v197, %v201
    %v204 = vmul.f32 %v200, %v202
    %v205 = vsub.f32 2.0, %v203
    %v206 = vsub.f32 2.0, %v204
    %v207 = vmul.f32 %v201, %v205
    %v208 = vmul.f32 %v202, %v206
    %v209 = vmul.f32 %v192, %v207
    %v210 = vmul.f32 %v194, %v208
    %vm211 = vcmask 64512
    %v213 = vsel %vm211, %v209, 0
    %215 = vmatprep.subr.mxu0 0.0
    %216 = vmatpush1.msra.mxu0 0.0
    %217 = vmatprep.subr.mxu0 0.0
    %218 = vmatpush1.msra.mxu0 0.0
    %219 = vmatprep.subr.mxu0 0.0
    %220 = vmatpush1.msra.mxu0 0.0
    %221 = vmatprep.subr.mxu0 0.0
    %222 = vmatpush1.msra.mxu0 0.0
    %223 = vmatprep.subr.mxu0 0.0
    %224 = vmatpush1.msra.mxu0 0.0
    %225 = vmatprep.subr.mxu0 0.0
    %226 = vmatpush1.msra.mxu0 0.0
    %227 = vmatprep.subr.mxu0 0.0
    %228 = vmatpush1.msra.mxu0 0.0
    %229 = vmatprep.subr.mxu0 0.0
    %230 = vmatpush1.msra.mxu0 0.0
    %231 = vmatprep.subr.mxu0 0.0
    %232 = vmatpush1.msra.mxu0 0.0
    %233 = vmatprep.subr.mxu0 0.0
    %234 = vmatpush1.msra.mxu0 0.0
    %235 = vmatprep.subr.mxu0 0.0
    %236 = vmatpush1.msra.mxu0 0.0
    %237 = vmatprep.subr.mxu0 0.0
    %238 = vmatpush1.msra.mxu0 0.0
    %239 = vmatprep.subr.mxu0 0.0
    %240 = vmatpush1.msra.mxu0 0.0
    %241 = vmatprep.subr.mxu0 0.0
    %242 = vmatpush1.msra.mxu0 0.0
    %243 = vmatprep.subr.mxu0 0.0
    %244 = vmatpush1.msra.mxu0 0.0
    %245 = vmatprep.subr.mxu0 0.0
    %246 = vmatpush1.msra.mxu0 %v29
    %247 = vmatprep.subr.mxu0 0.0
    %248 = vmatpush2.msra.mxu0 0.0
    %249 = vmatprep.subr.mxu0 0.0
    %250 = vmatpush2.msra.mxu0 0.0
    %251 = vmatprep.subr.mxu0 0.0
    %252 = vmatpush2.msra.mxu0 0.0
    %253 = vmatprep.subr.mxu0 0.0
    %254 = vmatpush2.msra.mxu0 0.0
    %255 = vmatprep.subr.mxu0 0.0
    %256 = vmatpush2.msra.mxu0 0.0
    %257 = vmatprep.subr.mxu0 0.0
    %258 = vmatpush2.msra.mxu0 0.0
    %259 = vmatprep.subr.mxu0 0.0
    %260 = vmatpush2.msra.mxu0 0.0
    %261 = vmatprep.subr.mxu0 0.0
    %262 = vmatpush2.msra.mxu0 0.0
    %263 = vmatprep.subr.mxu0 0.0
    %264 = vmatpush2.msra.mxu0 0.0
    %265 = vmatprep.subr.mxu0 0.0
    %266 = vmatpush2.msra.mxu0 0.0
    %267 = vmatprep.subr.mxu0 0.0
    %268 = vmatpush2.msra.mxu0 0.0
    %269 = vmatprep.subr.mxu0 0.0
    %270 = vmatpush2.msra.mxu0 0.0
    %271 = vmatprep.subr.mxu0 0.0
    %272 = vmatpush2.msra.mxu0 0.0
    %273 = vmatprep.subr.mxu0 0.0
    %274 = vmatpush2.msra.mxu0 0.0
    %275 = vmatprep.subr.mxu0 0.0
    %276 = vmatpush2.msra.mxu0 0.0
    %277 = vmatprep.subr.mxu0 0.0
    %278 = vmatpush2.msra.mxu0 0.0
    %279 = vmatprep.mubr.f32.mxu0 0.0
    %280 = vmatmul.mubr.f32.gmra.mxu0 %v213
    %v281 = vpop.f32.mrf.mxu0
    %v282 = vadd.f32 0.0, %v281
    %v283 = vpop.f32.mrf.mxu0
    %284 = vdwg.mxu0
    %v286 = vsel %vm211, %v210, 0
    %288 = vmatprep.subr.mxu0 0.0
    %289 = vmatpush1.msra.mxu0 0.0
    %290 = vmatprep.subr.mxu0 0.0
    %291 = vmatpush1.msra.mxu0 0.0
    %292 = vmatprep.subr.mxu0 0.0
    %293 = vmatpush1.msra.mxu0 0.0
    %294 = vmatprep.subr.mxu0 0.0
    %295 = vmatpush1.msra.mxu0 0.0
    %296 = vmatprep.subr.mxu0 0.0
    %297 = vmatpush1.msra.mxu0 0.0
    %298 = vmatprep.subr.mxu0 0.0
    %299 = vmatpush1.msra.mxu0 0.0
    %300 = vmatprep.subr.mxu0 0.0
    %301 = vmatpush1.msra.mxu0 0.0
    %302 = vmatprep.subr.mxu0 0.0
    %303 = vmatpush1.msra.mxu0 0.0
    %304 = vmatprep.subr.mxu0 0.0
    %305 = vmatpush1.msra.mxu0 0.0
    %306 = vmatprep.subr.mxu0 0.0
    %307 = vmatpush1.msra.mxu0 0.0
    %308 = vmatprep.subr.mxu0 0.0
    %309 = vmatpush1.msra.mxu0 0.0
    %310 = vmatprep.subr.mxu0 0.0
    %311 = vmatpush1.msra.mxu0 0.0
    %312 = vmatprep.subr.mxu0 0.0
    %313 = vmatpush1.msra.mxu0 0.0
    %314 = vmatprep.subr.mxu0 0.0
    %315 = vmatpush1.msra.mxu0 0.0
    %316 = vmatprep.subr.mxu0 0.0
    %317 = vmatpush1.msra.mxu0 0.0
    %318 = vmatprep.subr.mxu0 0.0
    %319 = vmatpush1.msra.mxu0 %v30
    %320 = vmatprep.subr.mxu0 0.0
    %321 = vmatpush2.msra.mxu0 0.0
    %322 = vmatprep.subr.mxu0 0.0
    %323 = vmatpush2.msra.mxu0 0.0
    %324 = vmatprep.subr.mxu0 0.0
    %325 = vmatpush2.msra.mxu0 0.0
    %326 = vmatprep.subr.mxu0 0.0
    %327 = vmatpush2.msra.mxu0 0.0
    %328 = vmatprep.subr.mxu0 0.0
    %329 = vmatpush2.msra.mxu0 0.0
    %330 = vmatprep.subr.mxu0 0.0
    %331 = vmatpush2.msra.mxu0 0.0
    %332 = vmatprep.subr.mxu0 0.0
    %333 = vmatpush2.msra.mxu0 0.0
    %334 = vmatprep.subr.mxu0 0.0
    %335 = vmatpush2.msra.mxu0 0.0
    %336 = vmatprep.subr.mxu0 0.0
    %337 = vmatpush2.msra.mxu0 0.0
    %338 = vmatprep.subr.mxu0 0.0
    %339 = vmatpush2.msra.mxu0 0.0
    %340 = vmatprep.subr.mxu0 0.0
    %341 = vmatpush2.msra.mxu0 0.0
    %342 = vmatprep.subr.mxu0 0.0
    %343 = vmatpush2.msra.mxu0 0.0
    %344 = vmatprep.subr.mxu0 0.0
    %345 = vmatpush2.msra.mxu0 0.0
    %346 = vmatprep.subr.mxu0 0.0
    %347 = vmatpush2.msra.mxu0 0.0
    %348 = vmatprep.subr.mxu0 0.0
    %349 = vmatpush2.msra.mxu0 0.0
    %350 = vmatprep.subr.mxu0 0.0
    %351 = vmatpush2.msra.mxu0 0.0
    %352 = vmatprep.mubr.f32.mxu0 0.0
    %353 = vmatmul.mubr.f32.gmra.mxu0 %v286
    %v354 = vpop.f32.mrf.mxu0
    %v355 = vadd.f32 0.0, %v354
    %v356 = vpop.f32.mrf.mxu0
    %357 = vdwg.mxu0
    %v360 = vrot.slane %v355, 7
    %vm361 = vcmask 1041409
    %v362 = vsel %vm361, %v360, %v282
    %vm364 = vcmask 254976
    %365 = vst.msk [vmem:[#allocation5] sm:$0x3] %vm364, %v362
    %v366 = vrot.slane %v210, 7
    %v367 = vsel %vm361, %v366, %v209
    %vm369 = vcmask 58368
    %370 = vst.msk [vmem:[#allocation6] sm:$0x3] %vm369, %v367
    // Predicated region
    $region14: #{tpu_custom_call.1} parent=1 // pred_check
      _
    $region15: #{tpu_custom_call.1} parent=1 // pred_check_branch
      %372 = sbr.rel (0) target = $region17
    $region16: #{tpu_custom_call.1} parent=1 // pred_region
      %s374 = ssub.s32 32, 32
      %375 = vsyncadd [#allocation4], %s374
      %s377 = sshll.u32 [#allocation5], 4
      %s378 = int_to_ptr.vmem [resolvable:$true] %s377
      %380 = dma.vmem_to_hbm [thread:$0]  %s378, 32, %s2, [#allocation4]
    $region17: #{tpu_custom_call.1} parent=1 // pred_fallthru
      _
    // Predicated region
    $region18: #{tpu_custom_call.1} parent=1 // pred_check
      _
    $region19: #{tpu_custom_call.1} parent=1 // pred_check_branch
      %382 = sbr.rel (0) target = $region21
    $region20: #{tpu_custom_call.1} parent=1 // pred_region
      %s384 = ssub.s32 32, 32
      %385 = vsyncadd [#allocation7], %s384
      %s387 = sshll.u32 [#allocation6], 4
      %s388 = int_to_ptr.vmem [resolvable:$true] %s387
      %390 = dma.vmem_to_hbm [thread:$0]  %s388, 32, %s3, [#allocation7]
    $region21: #{tpu_custom_call.1} parent=1 // pred_fallthru
      _
    // Predicated region
    $region22: #{tpu_custom_call.1} parent=1 // pred_check
      _
    $region23: #{tpu_custom_call.1} parent=1 // pred_check_branch
      %392 = sbr.rel (0) target = $region25
    $region24: #{tpu_custom_call.1} parent=1 // pred_region
      %393 = dma.done [#allocation4], 32
    $region25: #{tpu_custom_call.1} parent=1 // pred_fallthru
      _
    // Predicated region
    $region26: #{tpu_custom_call.1} parent=1 // pred_check
      _
    $region27: #{tpu_custom_call.1} parent=1 // pred_check_branch
      %395 = sbr.rel (0) target = $region29
    $region28: #{tpu_custom_call.1} parent=1 // pred_region
      %396 = dma.done [#allocation7], 32
    $region29: #{tpu_custom_call.1} parent=1 // pred_fallthru
      _
    %397 = vsyncpa [#allocation3], 1
    %398 = vsyncpa [#allocation4], 1
    %399 = vsyncpa [#allocation7], 1

</llo_original>
